<compile_context>
chip_gen: v6e
topology: v6e:2x2x1
jax: 0.10.0
libtpu: 0.0.40
codegen_flags: <defaults>
</compile_context>

<pallas_src>
import functools
import math

import jax
import jax.numpy as jnp
from jax import lax
from jax.experimental import pallas as pl
from jax.experimental.pallas import tpu as pltpu


# ---------------------------------------------------------------------------
# Tile pickers (respect the (8, 128) block constraint).
# ---------------------------------------------------------------------------
def _pick_sublane_tile(n, cap=256):
    """Second-minor tile: full extent if small, else a divisor of n preferring
    multiples of 128, then multiples of 8."""
    if n <= cap:
        return n
    t = cap - (cap % 128)
    while t >= 128:
        if n % t == 0:
            return t
        t -= 128
    t = cap - (cap % 8)
    while t >= 8:
        if n % t == 0:
            return t
        t -= 8
    # TODO(synk): pad ragged/prime sequence lengths instead of a full-extent block.
    return n


def _pick_lane_tile(n, cap=512):
    """Lane (minor) tile: full extent if small, else a 128-multiple divisor of n."""
    if n <= cap:
        return n
    t = cap - (cap % 128)
    while t >= 128:
        if n % t == 0:
            return t
        t -= 128
    # TODO(synk): no 128-aligned divisor (e.g. NX=1600) -> keep full width resident.
    return n


# ---------------------------------------------------------------------------
# Fused multi-output linear:  out_t = x @ W_t + b[t]   (t = 0..n_out-1)
# Grid = (N//tn, M//tm); column axis is OUTER so resident weight column blocks
# are fetched once; every (i, j) output block is written exactly once.
# ---------------------------------------------------------------------------
def _make_linear_kernel(n_out):
    def kernel(*refs):
        x_ref = refs[0]
        w_refs = refs[1:1 + n_out]
        b_ref = refs[1 + n_out]
        o_refs = refs[2 + n_out:]
        x = x_ref[...]
        b = b_ref[...]                                           # (n_out, tn) f32
        for t in range(n_out):
            y = jnp.dot(x, w_refs[t][...], preferred_element_type=jnp.float32)
            o_refs[t][...] = (y + b[t:t + 1, :]).astype(o_refs[t].dtype)
    return kernel


def _fused_linear(x2d, weights, bias_stack, out_dtype, tm, *, tn_cap=512):
    M, K = x2d.shape
    n_out = len(weights)
    N = weights[0].shape[1]
    tn = _pick_lane_tile(N, tn_cap)

    # TODO(synk): constant-index weight/bias blocks could use pl.Buffered(1) to
    # halve their VMEM once single-buffer pipeline_mode is battle-tested.
    in_specs = [pl.BlockSpec((tm, K), lambda j, i: (i, 0))]              # activations
    in_specs += [pl.BlockSpec((K, tn), lambda j, i: (0, j))
                 for _ in range(n_out)]                                  # weights
    in_specs += [pl.BlockSpec((n_out, tn), lambda j, i: (0, j))]         # biases
    out_specs = [pl.BlockSpec((tm, tn), lambda j, i: (i, j)) for _ in range(n_out)]
    out_shape = [jax.ShapeDtypeStruct((M, N), out_dtype) for _ in range(n_out)]

    outs = pl.pallas_call(
        _make_linear_kernel(n_out),
        out_shape=out_shape,
        grid=(N // tn, M // tm),
        in_specs=in_specs,
        out_specs=out_specs,
        compiler_params=pltpu.CompilerParams(
            dimension_semantics=("parallel", "parallel"),
            vmem_limit_bytes=32 * 1024 * 1024,
        ),
    )(x2d, *weights, bias_stack)
    if not isinstance(outs, (list, tuple)):
        outs = (outs,)
    return tuple(outs)


# ---------------------------------------------------------------------------
# Flash-style causal attention, all heads per grid step.
# Grid: (B, num_q_tiles, num_kv_tiles); kv is the (arbitrary) reduction axis.
# Q/K/V/out blocks are (1, tile, NX); heads are sliced in-register.
# ---------------------------------------------------------------------------
def _flash_kernel(q_ref, k_ref, v_ref, o_ref, m_sc, l_sc, acc_sc,
                  *, n_head, d, tq, tk, approx_recip):
    qi = pl.program_id(1)
    ki = pl.program_id(2)

    q_first = qi * tq
    q_last = q_first + (tq - 1)
    k_first = ki * tk
    k_last = k_first + (tk - 1)

    @pl.when(ki == 0)
    def _init():
        m_sc[...] = jnp.full_like(m_sc, -jnp.inf)
        l_sc[...] = jnp.zeros_like(l_sc)
        acc_sc[...] = jnp.zeros_like(acc_sc)

    def tile_update(masked):
        if masked:
            row = q_first + lax.broadcasted_iota(jnp.int32, (tq, tk), 0)
            col = k_first + lax.broadcasted_iota(jnp.int32, (tq, tk), 1)
            keep = col <= row
        for h in range(n_head):
            lo, hi = h * d, (h + 1) * d
            qh = q_ref[0, :, lo:hi]                              # [tq, d]
            kh = k_ref[0, :, lo:hi]                              # [tk, d]
            vh = v_ref[0, :, lo:hi]                              # [tk, d]
            # NT matmul: contract the last dim of both operands (no k.T).
            s = lax.dot_general(qh, kh, (((1,), (1,)), ((), ())),
                                preferred_element_type=jnp.float32)  # [tq, tk]
            if masked:
                s = jnp.where(keep, s, -1e10)   # GPT-2 `bias` buffer semantics
            m_prev = m_sc[h]                                     # [tq, 1]
            m_new = jnp.maximum(m_prev, s.max(axis=-1, keepdims=True))
            alpha = jnp.exp(m_prev - m_new)
            p = jnp.exp(s - m_new)
            l_sc[h] = alpha * l_sc[h] + p.sum(axis=-1, keepdims=True)
            acc_sc[h] = alpha * acc_sc[h] + lax.dot_general(
                p.astype(vh.dtype), vh, (((1,), (0,)), ((), ())),
                preferred_element_type=jnp.float32)
            m_sc[h] = m_new

    # Fully visible tile (entirely below the diagonal): no mask work at all.
    @pl.when(k_last <= q_first)
    def _full_tile():
        tile_update(masked=False)

    # Diagonal-straddling tile: build and apply the causal mask.
    @pl.when((k_first <= q_last) & (k_last > q_first))
    def _straddling_tile():
        tile_update(masked=True)

    # Finalize once the last contributing kv tile for this q tile is done;
    # later (causally dead) grid steps neither compute nor DMA new K/V.
    last_ki = q_last // tk
    @pl.when(ki == last_ki)
    def _finalize():
        outs = []
        for h in range(n_head):
            inv_l = pl.reciprocal(l_sc[h], approx=approx_recip)
            outs.append((acc_sc[h] * inv_l).astype(o_ref.dtype))
        o_ref[0] = jnp.concatenate(outs, axis=-1)                # [tq, NX] dense store


# ---------------------------------------------------------------------------
# One-time parameter preparation (weight split, scale folding, dtype casts).
# ---------------------------------------------------------------------------
def prepare_attention_params(params, *, n_head, scale, compute_dtype=jnp.bfloat16):
    w_attn, b_attn = params["w_attn"], params["b_attn"]          # (NX,3NX), (1,3NX)
    w_proj, b_proj = params["w_proj"], params["b_proj"]          # (NX,NX),  (1,NX)
    nx = w_attn.shape[0]
    d = nx // n_head
    wq, wk, wv = w_attn[:, :nx], w_attn[:, nx:2 * nx], w_attn[:, 2 * nx:]
    bq, bk, bv = b_attn[0, :nx], b_attn[0, nx:2 * nx], b_attn[0, 2 * nx:]
    if scale:
        s = 1.0 / math.sqrt(d)                                   # fold 1/sqrt(d) into Q
        wq = wq * s
        bq = bq * s
    cd = compute_dtype
    return {
        "wq": wq.astype(cd), "wk": wk.astype(cd), "wv": wv.astype(cd),
        "b_qkv": jnp.stack([bq, bk, bv], axis=0).astype(jnp.float32),   # (3, NX)
        "w_proj": w_proj.astype(cd),
        "b_proj": b_proj.astype(jnp.float32),                            # (1, NX)
    }


# ---------------------------------------------------------------------------
# Forward pass matching Attention.forward (eval mode).
# ---------------------------------------------------------------------------
def attention_forward(x, prep, *, n_head, q_tile_cap=256, kv_tile_cap=256):
    B, T, NX = x.shape
    assert NX % n_head == 0
    d = NX // n_head
    cd = prep["wq"].dtype
    approx_recip = (cd != jnp.float32)

    x2 = x.reshape(B * T, NX).astype(cd)
    tm = _pick_sublane_tile(B * T, 256)

    # 1) Fused QKV projection -> three head-minor (B*T, NX) activations.
    q2, k2, v2 = _fused_linear(x2, [prep["wq"], prep["wk"], prep["wv"]],
                               prep["b_qkv"], cd, tm)
    q3 = q2.reshape(B, T, NX)        # free reshapes; split_heads happens in-kernel
    k3 = k2.reshape(B, T, NX)
    v3 = v2.reshape(B, T, NX)

    # 2) Flash attention.
    tq = _pick_sublane_tile(T, q_tile_cap)    # use 128 caps on v5e
    tk = _pick_sublane_tile(T, kv_tile_cap)
    # Keep >= 2 parallel grid chunks so both v7x TensorCores are fed.
    while B * (T // tq) < 2 and tq % 16 == 0:
        tq //= 2

    def kv_index(b, qi, ki):
        # Clamp to the last causally-relevant kv tile: dead steps re-use the
        # previous block, so no K/V DMA is issued for them.
        last_ki = (qi * tq + tq - 1) // tk
        return (b, jnp.minimum(ki, last_ki), 0)

    kern = functools.partial(_flash_kernel, n_head=n_head, d=d, tq=tq, tk=tk,
                             approx_recip=approx_recip)
    # TODO(synk): sweep pipeline_mode=pl.Buffered(3) on the K/V specs and a
    # lower-triangle PrefetchScalarGridSpec schedule to also drop dead-step overhead.
    a = pl.pallas_call(
        kern,
        out_shape=jax.ShapeDtypeStruct((B, T, NX), cd),
        grid=(B, T // tq, T // tk),
        in_specs=[
            pl.BlockSpec((1, tq, NX), lambda b, qi, ki: (b, qi, 0)),   # Q
            pl.BlockSpec((1, tk, NX), kv_index),                       # K
            pl.BlockSpec((1, tk, NX), kv_index),                       # V
        ],
        out_specs=pl.BlockSpec((1, tq, NX), lambda b, qi, ki: (b, qi, 0)),
        scratch_shapes=[
            pltpu.VMEM((n_head, tq, 1), jnp.float32),   # running max
            pltpu.VMEM((n_head, tq, 1), jnp.float32),   # running denom
            pltpu.VMEM((n_head, tq, d), jnp.float32),   # output accumulator
        ],
        compiler_params=pltpu.CompilerParams(
            dimension_semantics=("parallel", "parallel", "arbitrary"),
            vmem_limit_bytes=32 * 1024 * 1024,
        ),
    )(q3, k3, v3)

    # 3) merge_heads is a free reshape (output already token-major, head-minor).
    a2 = a.reshape(B * T, NX)
    (out,) = _fused_linear(a2, [prep["w_proj"]], prep["b_proj"], jnp.float32, tm)
    # TODO(synk): nn.Dropout is defined in __init__ but never applied in the
    # abstract forward path; eval-mode (identity) behavior assumed.
    return out.reshape(B, T, NX)


# ---------------------------------------------------------------------------
# Plain-JAX reference mirroring the (canonical) PyTorch forward.
# ---------------------------------------------------------------------------
def attention_reference(x, params, *, n_head, scale):
    B, T, NX = x.shape
    d = NX // n_head
    qkv = x @ params["w_attn"] + params["b_attn"][0]
    q, k, v = jnp.split(qkv, 3, axis=-1)

    def split_heads(t):                          # [B, T, NX] -> [B, H, T, d]
        return t.reshape(B, T, n_head, d).transpose(0, 2, 1, 3)

    qh, kh, vh = split_heads(q), split_heads(k), split_heads(v)
    w = jnp.einsum("bhtd,bhsd->bhts", qh, kh)
    if scale:
        w = w / math.sqrt(d)
    mask = jnp.tril(jnp.ones((T, T), jnp.float32))
    w = w * mask - 1e10 * (1.0 - mask)
    p = jax.nn.softmax(w, axis=-1)
    a = jnp.einsum("bhts,bhsd->bhtd", p, vh)
    a = a.transpose(0, 2, 1, 3).reshape(B, T, NX)
    return a @ params["w_proj"] + params["b_proj"][0]


def init_params(key, nx):
    """Deterministic init mimicking nn.Linear default (U[-1/sqrt(in), 1/sqrt(in)])."""
    k1, k2, k3, k4 = jax.random.split(key, 4)
    bound = 1.0 / math.sqrt(nx)
    return {
        "w_attn": jax.random.uniform(k1, (nx, 3 * nx), jnp.float32, -bound, bound),
        "b_attn": jax.random.uniform(k2, (1, 3 * nx), jnp.float32, -bound, bound),
        "w_proj": jax.random.uniform(k3, (nx, nx), jnp.float32, -bound, bound),
        "b_proj": jax.random.uniform(k4, (1, nx), jnp.float32, -bound, bound),
    }


if __name__ == "__main__":
    B, T, NX, N_HEAD = 2, 8, 32, 4          # n_ctx = T = 8
    SCALE = True

    key = jax.random.PRNGKey(0)
    kx, kp = jax.random.split(key)
    x = jax.random.normal(kx, (B, T, NX), jnp.float32)
    params = init_params(kp, NX)

    ref = attention_reference(x, params, n_head=N_HEAD, scale=SCALE)

    # f32 path: strict check against the reference.
    prep_f32 = prepare_attention_params(params, n_head=N_HEAD, scale=SCALE,
                                        compute_dtype=jnp.float32)
    out_f32 = jax.block_until_ready(attention_forward(x, prep_f32, n_head=N_HEAD))
    assert out_f32.shape == (B, T, NX)
    assert jnp.allclose(out_f32, ref, atol=5e-4, rtol=5e-4), "f32 mismatch vs reference"

    # Default bf16 MXU-operand path (f32 accumulation): loose sanity check.
    prep_bf16 = prepare_attention_params(params, n_head=N_HEAD, scale=SCALE,
                                         compute_dtype=jnp.bfloat16)
    out_bf16 = jax.block_until_ready(attention_forward(x, prep_bf16, n_head=N_HEAD))
    assert out_bf16.shape == (B, T, NX)
    assert jnp.allclose(out_bf16, ref, atol=1e-1, rtol=1e-1), "bf16 mismatch vs reference"

    print("KERNEL_OK")
</pallas_src>

<mosaic_0001>
module attributes {stable_mosaic.version = 11 : i64} {
  func.func @kernel(%arg0: i32, %arg1: i32, %arg2: memref<16x32xf32, #tpu.memory_space<vmem>>, %arg3: memref<32x32xf32, #tpu.memory_space<vmem>>, %arg4: memref<32x32xf32, #tpu.memory_space<vmem>>, %arg5: memref<32x32xf32, #tpu.memory_space<vmem>>, %arg6: memref<3x32xf32, #tpu.memory_space<vmem>>, %arg7: memref<16x32xf32, #tpu.memory_space<vmem>>, %arg8: memref<16x32xf32, #tpu.memory_space<vmem>>, %arg9: memref<16x32xf32, #tpu.memory_space<vmem>>) attributes {dimension_semantics = [#tpu.dimension_semantics<parallel>, #tpu.dimension_semantics<parallel>], iteration_bounds = array<i64: 1, 1>, scalar_prefetch = 0 : i64, scratch_operands = 0 : i64, tpu.core_type = #tpu.core_type<tc>, window_params = [{transform_indices = @transform_0, window_bounds = array<i64: 16, 32>}, {transform_indices = @transform_1, window_bounds = array<i64: 32, 32>}, {transform_indices = @transform_2, window_bounds = array<i64: 32, 32>}, {transform_indices = @transform_3, window_bounds = array<i64: 32, 32>}, {transform_indices = @transform_4, window_bounds = array<i64: 3, 32>}, {transform_indices = @transform_5, window_bounds = array<i64: 16, 32>}, {transform_indices = @transform_6, window_bounds = array<i64: 16, 32>}, {transform_indices = @transform_7, window_bounds = array<i64: 16, 32>}]} {
    %c0 = arith.constant 0 : index
    %c0_0 = arith.constant 0 : index
    %0 = vector.load %arg2[%c0, %c0_0] : memref<16x32xf32, #tpu.memory_space<vmem>>, vector<16x32xf32>
    %c0_1 = arith.constant 0 : index
    %c0_2 = arith.constant 0 : index
    %1 = vector.load %arg6[%c0_1, %c0_2] : memref<3x32xf32, #tpu.memory_space<vmem>>, vector<3x32xf32>
    %c0_3 = arith.constant 0 : index
    %c0_4 = arith.constant 0 : index
    %2 = vector.load %arg3[%c0_3, %c0_4] : memref<32x32xf32, #tpu.memory_space<vmem>>, vector<32x32xf32>
    %cst = arith.constant dense<0.000000e+00> : vector<16x32xf32>
    %3 = tpu.matmul %0, %2, %cst {dimension_numbers = #tpu.dot_dimension_numbers<[1], [0], [0], [1], [0, 0, 1, 1], [], []>} : vector<16x32xf32>, vector<32x32xf32>, vector<16x32xf32> -> vector<16x32xf32>
    %4 = vector.extract_strided_slice %1 {offsets = [0, 0], sizes = [1, 32], strides = [1, 1]} : vector<3x32xf32> to vector<1x32xf32>
    %5 = vector.broadcast %4 : vector<1x32xf32> to vector<16x32xf32>
    %6 = arith.addf %3, %5 : vector<16x32xf32>
    %c0_5 = arith.constant 0 : index
    %c0_6 = arith.constant 0 : index
    %7 = vector.load %arg7[%c0_5, %c0_6] : memref<16x32xf32, #tpu.memory_space<vmem>>, vector<16x32xf32>
    tpu.vector_store %arg7[%c0_5, %c0_6], %6 {strides = array<i32>} : memref<16x32xf32, #tpu.memory_space<vmem>>, vector<16x32xf32>,
    %c0_7 = arith.constant 0 : index
    %c0_8 = arith.constant 0 : index
    %8 = vector.load %arg4[%c0_7, %c0_8] : memref<32x32xf32, #tpu.memory_space<vmem>>, vector<32x32xf32>
    %cst_9 = arith.constant dense<0.000000e+00> : vector<16x32xf32>
    %9 = tpu.matmul %0, %8, %cst_9 {dimension_numbers = #tpu.dot_dimension_numbers<[1], [0], [0], [1], [0, 0, 1, 1], [], []>} : vector<16x32xf32>, vector<32x32xf32>, vector<16x32xf32> -> vector<16x32xf32>
    %10 = vector.extract_strided_slice %1 {offsets = [1, 0], sizes = [1, 32], strides = [1, 1]} : vector<3x32xf32> to vector<1x32xf32>
    %11 = vector.broadcast %10 : vector<1x32xf32> to vector<16x32xf32>
    %12 = arith.addf %9, %11 : vector<16x32xf32>
    %c0_10 = arith.constant 0 : index
    %c0_11 = arith.constant 0 : index
    %13 = vector.load %arg8[%c0_10, %c0_11] : memref<16x32xf32, #tpu.memory_space<vmem>>, vector<16x32xf32>
    tpu.vector_store %arg8[%c0_10, %c0_11], %12 {strides = array<i32>} : memref<16x32xf32, #tpu.memory_space<vmem>>, vector<16x32xf32>,
    %c0_12 = arith.constant 0 : index
    %c0_13 = arith.constant 0 : index
    %14 = vector.load %arg5[%c0_12, %c0_13] : memref<32x32xf32, #tpu.memory_space<vmem>>, vector<32x32xf32>
    %cst_14 = arith.constant dense<0.000000e+00> : vector<16x32xf32>
    %15 = tpu.matmul %0, %14, %cst_14 {dimension_numbers = #tpu.dot_dimension_numbers<[1], [0], [0], [1], [0, 0, 1, 1], [], []>} : vector<16x32xf32>, vector<32x32xf32>, vector<16x32xf32> -> vector<16x32xf32>
    %16 = vector.extract_strided_slice %1 {offsets = [2, 0], sizes = [1, 32], strides = [1, 1]} : vector<3x32xf32> to vector<1x32xf32>
    %17 = vector.broadcast %16 : vector<1x32xf32> to vector<16x32xf32>
    %18 = arith.addf %15, %17 : vector<16x32xf32>
    %c0_15 = arith.constant 0 : index
    %c0_16 = arith.constant 0 : index
    %19 = vector.load %arg9[%c0_15, %c0_16] : memref<16x32xf32, #tpu.memory_space<vmem>>, vector<16x32xf32>
    tpu.vector_store %arg9[%c0_15, %c0_16], %18 {strides = array<i32>} : memref<16x32xf32, #tpu.memory_space<vmem>>, vector<16x32xf32>,
    return
  }
  func.func @transform_0(%arg0: i32, %arg1: i32) -> (i32, i32) {
    %c0_i32 = arith.constant 0 : i32
    %c0_i32_0 = arith.constant 0 : i32
    return %arg1, %c0_i32 : i32, i32
  }
  func.func @transform_1(%arg0: i32, %arg1: i32) -> (i32, i32) {
    %c0_i32 = arith.constant 0 : i32
    %c0_i32_0 = arith.constant 0 : i32
    return %c0_i32, %arg0 : i32, i32
  }
  func.func @transform_2(%arg0: i32, %arg1: i32) -> (i32, i32) {
    %c0_i32 = arith.constant 0 : i32
    %c0_i32_0 = arith.constant 0 : i32
    return %c0_i32, %arg0 : i32, i32
  }
  func.func @transform_3(%arg0: i32, %arg1: i32) -> (i32, i32) {
    %c0_i32 = arith.constant 0 : i32
    %c0_i32_0 = arith.constant 0 : i32
    return %c0_i32, %arg0 : i32, i32
  }
  func.func @transform_4(%arg0: i32, %arg1: i32) -> (i32, i32) {
    %c0_i32 = arith.constant 0 : i32
    %c0_i32_0 = arith.constant 0 : i32
    return %c0_i32, %arg0 : i32, i32
  }
  func.func @transform_5(%arg0: i32, %arg1: i32) -> (i32, i32) {
    %c0_i32 = arith.constant 0 : i32
    return %arg1, %arg0 : i32, i32
  }
  func.func @transform_6(%arg0: i32, %arg1: i32) -> (i32, i32) {
    %c0_i32 = arith.constant 0 : i32
    return %arg1, %arg0 : i32, i32
  }
  func.func @transform_7(%arg0: i32, %arg1: i32) -> (i32, i32) {
    %c0_i32 = arith.constant 0 : i32
    return %arg1, %arg0 : i32, i32
  }
}

</mosaic_0001>

<llo_original>
// kernel: tpu_custom_call.1
$region0: #{tpu_custom_call.1}
  #allocation0 [shape = 'u32[]', space=smem, size = 0x4, offset = 0x4, fixed_abs, tag = 'smem constant byte address 0x4 - core index']
  #allocation1 [shape = 'u32[144,128]{1,0:T(1,128)}', space=vmem, size = 0x12000, scoped, tag = 'internal scratch']
  %s0 = inlined_call_operand.hbm [shape: f32[16,32], index: 0, kind: input, shape index: {}]
  %s1 = inlined_call_operand.hbm [shape: f32[32,32], index: 1, kind: input, shape index: {}]
  %s2 = inlined_call_operand.hbm [shape: f32[32,32], index: 2, kind: input, shape index: {}]
  %s3 = inlined_call_operand.hbm [shape: f32[32,32], index: 3, kind: input, shape index: {}]
  %s4 = inlined_call_operand.vmem [shape: f32[3,32], index: 4, kind: input, shape index: {}]
  %s5 = inlined_call_operand.hbm [shape: f32[16,32], index: 5, kind: output, shape index: {0}]
  %s6 = inlined_call_operand.hbm [shape: f32[16,32], index: 6, kind: output, shape index: {1}]
  %s7 = inlined_call_operand.hbm [shape: f32[16,32], index: 7, kind: output, shape index: {2}]
  %8 = xla_tuple %s5, %s6, %s7
  %s9 = sld [smem:[#allocation0]]
  $region62: #{tpu_custom_call.1} parent=0
    _
  %s11 = ssub.s32 1, %s9
  %s12 = scalar_select 0, %s11, %s9
  $region1: #{tpu_custom_call.1} parent=0
    #allocation2 [shape = 'u8[8192]{0}', space=vmem, size = 0x2000, scoped, tag = 'input window, operand 0, single buffered']
    #allocation3 [shape = 's32[1]{0}', space=sflag, size = 0x4, scoped, tag = 'scoped memory for tpu_custom_call.1']
    #allocation4 [shape = 's32[1]{0}', space=sflag, size = 0x4, scoped, tag = 'scoped memory for tpu_custom_call.1']
    #allocation5 [shape = 'u8[16384]{0}', space=vmem, size = 0x4000, scoped, tag = 'input window, operand 1, single buffered']
    #allocation6 [shape = 's32[1]{0}', space=sflag, size = 0x4, scoped, tag = 'scoped memory for tpu_custom_call.1']
    #allocation7 [shape = 'u8[16384]{0}', space=vmem, size = 0x4000, scoped, tag = 'input window, operand 2, single buffered']
    #allocation8 [shape = 'u8[16384]{0}', space=vmem, size = 0x4000, scoped, tag = 'input window, operand 3, single buffered']
    #allocation9 [shape = 's32[1]{0}', space=sflag, size = 0x4, scoped, tag = 'scoped memory for tpu_custom_call.1']
    #allocation10 [shape = 'u8[8192]{0}', space=vmem, size = 0x2000, scoped, tag = 'output window, operand 0, single buffered']
    #allocation11 [shape = 'u8[8192]{0}', space=vmem, size = 0x2000, scoped, tag = 'output window, operand 1, single buffered']
    #allocation12 [shape = 's32[1]{0}', space=sflag, size = 0x4, scoped, tag = 'scoped memory for tpu_custom_call.1']
    #allocation13 [shape = 'u8[8192]{0}', space=vmem, size = 0x2000, scoped, tag = 'output window, operand 2, single buffered']
    %13 = vsyncpa [#allocation3], 0
    %14 = vsyncpa [#allocation6], 0
    %15 = vsyncpa [#allocation9], 0
    %16 = vsyncpa [#allocation4], 0
    %17 = vsyncpa [#allocation12], 0
    // Predicated region
    $region2: #{tpu_custom_call.1} parent=1 // pred_check
      _
    $region3: #{tpu_custom_call.1} parent=1 // pred_check_branch
      %19 = sbr.rel (0) target = $region5
    $region4: #{tpu_custom_call.1} parent=1 // pred_region
      %s21 = ssub.s32 256, 256
      %22 = vsyncadd [#allocation3], %s21
      %s23 = sshll.u32 [#allocation2], 4
      %s24 = int_to_ptr.vmem [resolvable:$true] %s23
      %29 = dma.hbm_to_vmem [thread:$0]  %s0, 256, %s24, [#allocation3], 128, 128, 8
    $region5: #{tpu_custom_call.1} parent=1 // pred_fallthru
      _
    // Predicated region
    $region6: #{tpu_custom_call.1} parent=1 // pred_check
      _
    $region7: #{tpu_custom_call.1} parent=1 // pred_check_branch
      %31 = sbr.rel (0) target = $region9
    $region8: #{tpu_custom_call.1} parent=1 // pred_region
      %s33 = ssub.s32 512, 512
      %34 = vsyncadd [#allocation6], %s33
      %s35 = sshll.u32 [#allocation5], 4
      %s36 = int_to_ptr.vmem [resolvable:$true] %s35
      %41 = dma.hbm_to_vmem [thread:$0]  %s1, 512, %s36, [#allocation6], 128, 128, 8
    $region9: #{tpu_custom_call.1} parent=1 // pred_fallthru
      _
    // Predicated region
    $region10: #{tpu_custom_call.1} parent=1 // pred_check
      _
    $region11: #{tpu_custom_call.1} parent=1 // pred_check_branch
      %43 = sbr.rel (0) target = $region13
    $region12: #{tpu_custom_call.1} parent=1 // pred_region
      %s45 = ssub.s32 512, 512
      %46 = vsyncadd [#allocation6], %s45
      %s47 = sshll.u32 [#allocation7], 4
      %s48 = int_to_ptr.vmem [resolvable:$true] %s47
      %53 = dma.hbm_to_vmem [thread:$0]  %s2, 512, %s48, [#allocation6], 128, 128, 8
    $region13: #{tpu_custom_call.1} parent=1 // pred_fallthru
      _
    // Predicated region
    $region14: #{tpu_custom_call.1} parent=1 // pred_check
      _
    $region15: #{tpu_custom_call.1} parent=1 // pred_check_branch
      %55 = sbr.rel (0) target = $region17
    $region16: #{tpu_custom_call.1} parent=1 // pred_region
      %s57 = ssub.s32 512, 512
      %58 = vsyncadd [#allocation9], %s57
      %s59 = sshll.u32 [#allocation8], 4
      %s60 = int_to_ptr.vmem [resolvable:$true] %s59
      %65 = dma.hbm_to_vmem [thread:$0]  %s3, 512, %s60, [#allocation9], 128, 128, 8
    $region17: #{tpu_custom_call.1} parent=1 // pred_fallthru
      _
    // Predicated region
    $region18: #{tpu_custom_call.1} parent=1 // pred_check
      _
    $region19: #{tpu_custom_call.1} parent=1 // pred_check_branch
      %67 = sbr.rel (0) target = $region21
    $region20: #{tpu_custom_call.1} parent=1 // pred_region
      _
    $region21: #{tpu_custom_call.1} parent=1 // pred_fallthru
      _
    // Predicated region
    $region22: #{tpu_custom_call.1} parent=1 // pred_check
      _
    $region23: #{tpu_custom_call.1} parent=1 // pred_check_branch
      %69 = sbr.rel (0) target = $region25
    $region24: #{tpu_custom_call.1} parent=1 // pred_region
      %70 = dma.done [#allocation3], 256
    $region25: #{tpu_custom_call.1} parent=1 // pred_fallthru
      _
    // Predicated region
    $region26: #{tpu_custom_call.1} parent=1 // pred_check
      _
    $region27: #{tpu_custom_call.1} parent=1 // pred_check_branch
      %72 = sbr.rel (0) target = $region29
    $region28: #{tpu_custom_call.1} parent=1 // pred_region
      %73 = dma.done [#allocation6], 512
    $region29: #{tpu_custom_call.1} parent=1 // pred_fallthru
      _
    // Predicated region
    $region30: #{tpu_custom_call.1} parent=1 // pred_check
      _
    $region31: #{tpu_custom_call.1} parent=1 // pred_check_branch
      %75 = sbr.rel (0) target = $region33
    $region32: #{tpu_custom_call.1} parent=1 // pred_region
      %76 = dma.done [#allocation6], 512
    $region33: #{tpu_custom_call.1} parent=1 // pred_fallthru
      _
    // Predicated region
    $region34: #{tpu_custom_call.1} parent=1 // pred_check
      _
    $region35: #{tpu_custom_call.1} parent=1 // pred_check_branch
      %78 = sbr.rel (0) target = $region37
    $region36: #{tpu_custom_call.1} parent=1 // pred_region
      %79 = dma.done [#allocation9], 512
    $region37: #{tpu_custom_call.1} parent=1 // pred_fallthru
      _
    %v80 = vld [vmem:[#allocation2] sm:$0xff]
    %v81 = vld [vmem:[#allocation2 + $0x8] sm:$0xff]
    %v82 = vld [vmem:[%s4] sm:$0x7]
    %v83 = vld [vmem:[#allocation5] sm:$0xff]
    %v84 = vld [vmem:[#allocation5 + $0x8] sm:$0xff]
    %v85 = vld [vmem:[#allocation5 + $0x10] sm:$0xff]
    %v86 = vld [vmem:[#allocation5 + $0x18] sm:$0xff]
    %v87 = vlaneseq
    %v88 = vshrl.u32 %v87, 7
    %v89 = vsub.s32 0, %v88
    %v90 = vrot.slane %v82, %v89
    %vm91 = vcmask 261120
    %v93 = vsel %vm91, %v80, 0
    %v96 = vsel %vm91, %v81, 0
    %98 = vmatprep.subr.mxu0 0.0
    %99 = vmatpush1.msra.mxu0 0.0
    %100 = vmatprep.subr.mxu0 0.0
    %101 = vmatpush1.msra.mxu0 0.0
    %102 = vmatprep.subr.mxu0 0.0
    %103 = vmatpush1.msra.mxu0 0.0
    %104 = vmatprep.subr.mxu0 0.0
    %105 = vmatpush1.msra.mxu0 0.0
    %106 = vmatprep.subr.mxu0 0.0
    %107 = vmatpush1.msra.mxu0 0.0
    %108 = vmatprep.subr.mxu0 0.0
    %109 = vmatpush1.msra.mxu0 0.0
    %110 = vmatprep.subr.mxu0 0.0
    %111 = vmatpush1.msra.mxu0 0.0
    %112 = vmatprep.subr.mxu0 0.0
    %113 = vmatpush1.msra.mxu0 0.0
    %114 = vmatprep.subr.mxu0 0.0
    %115 = vmatpush1.msra.mxu0 0.0
    %116 = vmatprep.subr.mxu0 0.0
    %117 = vmatpush1.msra.mxu0 0.0
    %118 = vmatprep.subr.mxu0 0.0
    %119 = vmatpush1.msra.mxu0 0.0
    %120 = vmatprep.subr.mxu0 0.0
    %121 = vmatpush1.msra.mxu0 0.0
    %122 = vmatprep.subr.mxu0 0.0
    %123 = vmatpush1.msra.mxu0 %v86
    %124 = vmatprep.subr.mxu0 0.0
    %125 = vmatpush1.msra.mxu0 %v85
    %126 = vmatprep.subr.mxu0 0.0
    %127 = vmatpush1.msra.mxu0 %v84
    %128 = vmatprep.subr.mxu0 0.0
    %129 = vmatpush1.msra.mxu0 %v83
    %130 = vmatprep.subr.mxu0 0.0
    %131 = vmatpush2.msra.mxu0 0.0
    %132 = vmatprep.subr.mxu0 0.0
    %133 = vmatpush2.msra.mxu0 0.0
    %134 = vmatprep.subr.mxu0 0.0
    %135 = vmatpush2.msra.mxu0 0.0
    %136 = vmatprep.subr.mxu0 0.0
    %137 = vmatpush2.msra.mxu0 0.0
    %138 = vmatprep.subr.mxu0 0.0
    %139 = vmatpush2.msra.mxu0 0.0
    %140 = vmatprep.subr.mxu0 0.0
    %141 = vmatpush2.msra.mxu0 0.0
    %142 = vmatprep.subr.mxu0 0.0
    %143 = vmatpush2.msra.mxu0 0.0
    %144 = vmatprep.subr.mxu0 0.0
    %145 = vmatpush2.msra.mxu0 0.0
    %146 = vmatprep.subr.mxu0 0.0
    %147 = vmatpush2.msra.mxu0 0.0
    %148 = vmatprep.subr.mxu0 0.0
    %149 = vmatpush2.msra.mxu0 0.0
    %150 = vmatprep.subr.mxu0 0.0
    %151 = vmatpush2.msra.mxu0 0.0
    %152 = vmatprep.subr.mxu0 0.0
    %153 = vmatpush2.msra.mxu0 0.0
    %154 = vmatprep.subr.mxu0 0.0
    %155 = vmatpush2.msra.mxu0 0.0
    %156 = vmatprep.subr.mxu0 0.0
    %157 = vmatpush2.msra.mxu0 0.0
    %158 = vmatprep.subr.mxu0 0.0
    %159 = vmatpush2.msra.mxu0 0.0
    %160 = vmatprep.subr.mxu0 0.0
    %161 = vmatpush2.msra.mxu0 0.0
    %162 = vmatprep.mubr.f32.mxu0 0.0
    %163 = vmatmul.mubr.f32.gmra.mxu0 %v93
    %v164 = vpop.f32.mrf.mxu0
    %v165 = vadd.f32 %v90, %v164
    %v166 = vpop.f32.mrf.mxu0
    %167 = vmatprep.mubr.f32.mxu0 0.0
    %168 = vmatmul.mubr.f32.gmra.mxu0 %v96
    %v169 = vpop.f32.mrf.mxu0
    %v170 = vadd.f32 %v90, %v169
    %v171 = vpop.f32.mrf.mxu0
    %172 = vdwg.mxu0
    %173 = vst.msk [vmem:[#allocation10] sm:$0xff] %vm91, %v165
    %174 = vst.msk [vmem:[#allocation10 + $0x8] sm:$0xff] %vm91, %v170
    %v175 = vld [vmem:[#allocation7] sm:$0xff]
    %v176 = vld [vmem:[#allocation7 + $0x8] sm:$0xff]
    %v177 = vld [vmem:[#allocation7 + $0x10] sm:$0xff]
    %v178 = vld [vmem:[#allocation7 + $0x18] sm:$0xff]
    %v179 = vlaneseq
    %v180 = vshrl.u32 %v179, 7
    %v181 = vsub.s32 1, %v180
    %v182 = vrot.slane %v82, %v181
    %183 = vmatprep.subr.mxu0 0.0
    %184 = vmatpush1.msra.mxu0 0.0
    %185 = vmatprep.subr.mxu0 0.0
    %186 = vmatpush1.msra.mxu0 0.0
    %187 = vmatprep.subr.mxu0 0.0
    %188 = vmatpush1.msra.mxu0 0.0
    %189 = vmatprep.subr.mxu0 0.0
    %190 = vmatpush1.msra.mxu0 0.0
    %191 = vmatprep.subr.mxu0 0.0
    %192 = vmatpush1.msra.mxu0 0.0
    %193 = vmatprep.subr.mxu0 0.0
    %194 = vmatpush1.msra.mxu0 0.0
    %195 = vmatprep.subr.mxu0 0.0
    %196 = vmatpush1.msra.mxu0 0.0
    %197 = vmatprep.subr.mxu0 0.0
    %198 = vmatpush1.msra.mxu0 0.0
    %199 = vmatprep.subr.mxu0 0.0
    %200 = vmatpush1.msra.mxu0 0.0
    %201 = vmatprep.subr.mxu0 0.0
    %202 = vmatpush1.msra.mxu0 0.0
    %203 = vmatprep.subr.mxu0 0.0
    %204 = vmatpush1.msra.mxu0 0.0
    %205 = vmatprep.subr.mxu0 0.0
    %206 = vmatpush1.msra.mxu0 0.0
    %207 = vmatprep.subr.mxu0 0.0
    %208 = vmatpush1.msra.mxu0 %v178
    %209 = vmatprep.subr.mxu0 0.0
    %210 = vmatpush1.msra.mxu0 %v177
    %211 = vmatprep.subr.mxu0 0.0
    %212 = vmatpush1.msra.mxu0 %v176
    %213 = vmatprep.subr.mxu0 0.0
    %214 = vmatpush1.msra.mxu0 %v175
    %215 = vmatprep.subr.mxu0 0.0
    %216 = vmatpush2.msra.mxu0 0.0
    %217 = vmatprep.subr.mxu0 0.0
    %218 = vmatpush2.msra.mxu0 0.0
    %219 = vmatprep.subr.mxu0 0.0
    %220 = vmatpush2.msra.mxu0 0.0
    %221 = vmatprep.subr.mxu0 0.0
    %222 = vmatpush2.msra.mxu0 0.0
    %223 = vmatprep.subr.mxu0 0.0
    %224 = vmatpush2.msra.mxu0 0.0
    %225 = vmatprep.subr.mxu0 0.0
    %226 = vmatpush2.msra.mxu0 0.0
    %227 = vmatprep.subr.mxu0 0.0
    %228 = vmatpush2.msra.mxu0 0.0
    %229 = vmatprep.subr.mxu0 0.0
    %230 = vmatpush2.msra.mxu0 0.0
    %231 = vmatprep.subr.mxu0 0.0
    %232 = vmatpush2.msra.mxu0 0.0
    %233 = vmatprep.subr.mxu0 0.0
    %234 = vmatpush2.msra.mxu0 0.0
    %235 = vmatprep.subr.mxu0 0.0
    %236 = vmatpush2.msra.mxu0 0.0
    %237 = vmatprep.subr.mxu0 0.0
    %238 = vmatpush2.msra.mxu0 0.0
    %239 = vmatprep.subr.mxu0 0.0
    %240 = vmatpush2.msra.mxu0 0.0
    %241 = vmatprep.subr.mxu0 0.0
    %242 = vmatpush2.msra.mxu0 0.0
    %243 = vmatprep.subr.mxu0 0.0
    %244 = vmatpush2.msra.mxu0 0.0
    %245 = vmatprep.subr.mxu0 0.0
    %246 = vmatpush2.msra.mxu0 0.0
    %247 = vmatprep.mubr.f32.mxu0 0.0
    %248 = vmatmul.mubr.f32.gmra.mxu0 %v93
    %v249 = vpop.f32.mrf.mxu0
    %v250 = vadd.f32 %v182, %v249
    %v251 = vpop.f32.mrf.mxu0
    %252 = vmatprep.mubr.f32.mxu0 0.0
    %253 = vmatmul.mubr.f32.gmra.mxu0 %v96
    %v254 = vpop.f32.mrf.mxu0
    %v255 = vadd.f32 %v182, %v254
    %v256 = vpop.f32.mrf.mxu0
    %257 = vdwg.mxu0
    %258 = vst.msk [vmem:[#allocation11] sm:$0xff] %vm91, %v250
    %259 = vst.msk [vmem:[#allocation11 + $0x8] sm:$0xff] %vm91, %v255
    %v260 = vld [vmem:[#allocation8] sm:$0xff]
    %v261 = vld [vmem:[#allocation8 + $0x8] sm:$0xff]
    %v262 = vld [vmem:[#allocation8 + $0x10] sm:$0xff]
    %v263 = vld [vmem:[#allocation8 + $0x18] sm:$0xff]
    %v264 = vlaneseq
    %v265 = vshrl.u32 %v264, 7
    %v266 = vsub.s32 2, %v265
    %v267 = vrot.slane %v82, %v266
    %268 = vmatprep.subr.mxu0 0.0
    %269 = vmatpush1.msra.mxu0 0.0
    %270 = vmatprep.subr.mxu0 0.0
    %271 = vmatpush1.msra.mxu0 0.0
    %272 = vmatprep.subr.mxu0 0.0
    %273 = vmatpush1.msra.mxu0 0.0
    %274 = vmatprep.subr.mxu0 0.0
    %275 = vmatpush1.msra.mxu0 0.0
    %276 = vmatprep.subr.mxu0 0.0
    %277 = vmatpush1.msra.mxu0 0.0
    %278 = vmatprep.subr.mxu0 0.0
    %279 = vmatpush1.msra.mxu0 0.0
    %280 = vmatprep.subr.mxu0 0.0
    %281 = vmatpush1.msra.mxu0 0.0
    %282 = vmatprep.subr.mxu0 0.0
    %283 = vmatpush1.msra.mxu0 0.0
    %284 = vmatprep.subr.mxu0 0.0
    %285 = vmatpush1.msra.mxu0 0.0
    %286 = vmatprep.subr.mxu0 0.0
    %287 = vmatpush1.msra.mxu0 0.0
    %288 = vmatprep.subr.mxu0 0.0
    %289 = vmatpush1.msra.mxu0 0.0
    %290 = vmatprep.subr.mxu0 0.0
    %291 = vmatpush1.msra.mxu0 0.0
    %292 = vmatprep.subr.mxu0 0.0
    %293 = vmatpush1.msra.mxu0 %v263
    %294 = vmatprep.subr.mxu0 0.0
    %295 = vmatpush1.msra.mxu0 %v262
    %296 = vmatprep.subr.mxu0 0.0
    %297 = vmatpush1.msra.mxu0 %v261
    %298 = vmatprep.subr.mxu0 0.0
    %299 = vmatpush1.msra.mxu0 %v260
    %300 = vmatprep.subr.mxu0 0.0
    %301 = vmatpush2.msra.mxu0 0.0
    %302 = vmatprep.subr.mxu0 0.0
    %303 = vmatpush2.msra.mxu0 0.0
    %304 = vmatprep.subr.mxu0 0.0
    %305 = vmatpush2.msra.mxu0 0.0
    %306 = vmatprep.subr.mxu0 0.0
    %307 = vmatpush2.msra.mxu0 0.0
    %308 = vmatprep.subr.mxu0 0.0
    %309 = vmatpush2.msra.mxu0 0.0
    %310 = vmatprep.subr.mxu0 0.0
    %311 = vmatpush2.msra.mxu0 0.0
    %312 = vmatprep.subr.mxu0 0.0
    %313 = vmatpush2.msra.mxu0 0.0
    %314 = vmatprep.subr.mxu0 0.0
    %315 = vmatpush2.msra.mxu0 0.0
    %316 = vmatprep.subr.mxu0 0.0
    %317 = vmatpush2.msra.mxu0 0.0
    %318 = vmatprep.subr.mxu0 0.0
    %319 = vmatpush2.msra.mxu0 0.0
    %320 = vmatprep.subr.mxu0 0.0
    %321 = vmatpush2.msra.mxu0 0.0
    %322 = vmatprep.subr.mxu0 0.0
    %323 = vmatpush2.msra.mxu0 0.0
    %324 = vmatprep.subr.mxu0 0.0
    %325 = vmatpush2.msra.mxu0 0.0
    %326 = vmatprep.subr.mxu0 0.0
    %327 = vmatpush2.msra.mxu0 0.0
    %328 = vmatprep.subr.mxu0 0.0
    %329 = vmatpush2.msra.mxu0 0.0
    %330 = vmatprep.subr.mxu0 0.0
    %331 = vmatpush2.msra.mxu0 0.0
    %332 = vmatprep.mubr.f32.mxu0 0.0
    %333 = vmatmul.mubr.f32.gmra.mxu0 %v93
    %v334 = vpop.f32.mrf.mxu0
    %v335 = vadd.f32 %v267, %v334
    %v336 = vpop.f32.mrf.mxu0
    %337 = vmatprep.mubr.f32.mxu0 0.0
    %338 = vmatmul.mubr.f32.gmra.mxu0 %v96
    %v339 = vpop.f32.mrf.mxu0
    %v340 = vadd.f32 %v267, %v339
    %v341 = vpop.f32.mrf.mxu0
    %342 = vdwg.mxu0
    %343 = vst.msk [vmem:[#allocation13] sm:$0xff] %vm91, %v335
    %344 = vst.msk [vmem:[#allocation13 + $0x8] sm:$0xff] %vm91, %v340
    // Predicated region
    $region38: #{tpu_custom_call.1} parent=1 // pred_check
      _
    $region39: #{tpu_custom_call.1} parent=1 // pred_check_branch
      %346 = sbr.rel (0) target = $region41
    $region40: #{tpu_custom_call.1} parent=1 // pred_region
      %s348 = ssub.s32 256, 256
      %349 = vsyncadd [#allocation4], %s348
      %s350 = sshll.u32 [#allocation10], 4
      %s351 = int_to_ptr.vmem [resolvable:$true] %s350
      %356 = dma.vmem_to_hbm [thread:$0]  %s351, 256, %s5, [#allocation4], 128, 128, 8
    $region41: #{tpu_custom_call.1} parent=1 // pred_fallthru
      _
    // Predicated region
    $region42: #{tpu_custom_call.1} parent=1 // pred_check
      _
    $region43: #{tpu_custom_call.1} parent=1 // pred_check_branch
      %358 = sbr.rel (0) target = $region45
    $region44: #{tpu_custom_call.1} parent=1 // pred_region
      %s360 = ssub.s32 256, 256
      %361 = vsyncadd [#allocation12], %s360
      %s362 = sshll.u32 [#allocation11], 4
      %s363 = int_to_ptr.vmem [resolvable:$true] %s362
      %368 = dma.vmem_to_hbm [thread:$0]  %s363, 256, %s6, [#allocation12], 128, 128, 8
    $region45: #{tpu_custom_call.1} parent=1 // pred_fallthru
      _
    // Predicated region
    $region46: #{tpu_custom_call.1} parent=1 // pred_check
      _
    $region47: #{tpu_custom_call.1} parent=1 // pred_check_branch
      %370 = sbr.rel (0) target = $region49
    $region48: #{tpu_custom_call.1} parent=1 // pred_region
      %s372 = ssub.s32 256, 256
      %373 = vsyncadd [#allocation12], %s372
      %s374 = sshll.u32 [#allocation13], 4
      %s375 = int_to_ptr.vmem [resolvable:$true] %s374
      %380 = dma.vmem_to_hbm [thread:$0]  %s375, 256, %s7, [#allocation12], 128, 128, 8
    $region49: #{tpu_custom_call.1} parent=1 // pred_fallthru
      _
    // Predicated region
    $region50: #{tpu_custom_call.1} parent=1 // pred_check
      _
    $region51: #{tpu_custom_call.1} parent=1 // pred_check_branch
      %382 = sbr.rel (0) target = $region53
    $region52: #{tpu_custom_call.1} parent=1 // pred_region
      %383 = dma.done [#allocation4], 256
    $region53: #{tpu_custom_call.1} parent=1 // pred_fallthru
      _
    // Predicated region
    $region54: #{tpu_custom_call.1} parent=1 // pred_check
      _
    $region55: #{tpu_custom_call.1} parent=1 // pred_check_branch
      %385 = sbr.rel (0) target = $region57
    $region56: #{tpu_custom_call.1} parent=1 // pred_region
      %386 = dma.done [#allocation12], 256
    $region57: #{tpu_custom_call.1} parent=1 // pred_fallthru
      _
    // Predicated region
    $region58: #{tpu_custom_call.1} parent=1 // pred_check
      _
    $region59: #{tpu_custom_call.1} parent=1 // pred_check_branch
      %388 = sbr.rel (0) target = $region61
    $region60: #{tpu_custom_call.1} parent=1 // pred_region
      %389 = dma.done [#allocation12], 256
    $region61: #{tpu_custom_call.1} parent=1 // pred_fallthru
      _
    %390 = vsyncpa [#allocation3], 1
    %391 = vsyncpa [#allocation6], 1
    %392 = vsyncpa [#allocation9], 1
    %393 = vsyncpa [#allocation4], 1
    %394 = vsyncpa [#allocation12], 1

</llo_original>
